<compile_context>
chip_gen: v6e
topology: v6e:2x2x1
jax: 0.10.0
libtpu: 0.0.40
codegen_flags: <defaults>
</compile_context>

<pallas_src>
import functools
import math

import jax
import jax.numpy as jnp
from jax.experimental import pallas as pl
from jax.experimental.pallas import tpu as pltpu

_LANE = 128
_FAST_PATH_MAX_BYTES = 256 * 1024          # below this, skip Pallas entirely
_TARGET_STEP_HBM_BYTES = 8 * 1024 * 1024   # ~4 MiB per input per grid step


def _norm_ref_f32(x1, x2, scale, out_dtype):
    """Pure-JAX path (tiny inputs / fallbacks); f32 accumulation, input-dtype out."""
    d = x1.astype(jnp.float32) - x2.astype(jnp.float32)
    return (jnp.sqrt(jnp.sum(d * d, axis=-1)) * scale).astype(out_dtype)


def _vmem_capacity_bytes():
    try:
        cap = getattr(pltpu.get_tpu_info(), "vmem_capacity_bytes", None)
        if cap:
            return int(cap)
    except Exception:
        pass
    return 64 * 1024 * 1024   # conservative default: v7x has the smallest VMEM


def _choose_tiling(n_groups, d_dim, in_itemsize, out_itemsize):
    """Pick how many 128-row groups to process per grid step, from D/dtype/VMEM."""
    lane_d = -(-d_dim // _LANE) * _LANE      # D is lane-padded to 128 inside VMEM
    cap = _vmem_capacity_bytes()
    budget = (cap * 5) // 8                  # ~40 MiB on v7x, ~80 MiB on v5e/v6e
    # Per 128-row group: 2 inputs x 2 pipeline buffers (lane-padded, input dtype)
    # + ~2 f32 groups of headroom for in-kernel elementwise/reduce intermediates.
    group_vmem = 4 * _LANE * lane_d * in_itemsize + 2 * _LANE * lane_d * 4
    group_hbm = 2 * _LANE * d_dim * in_itemsize
    g_cap = max(budget // group_vmem, 1)
    g_target = max(_TARGET_STEP_HBM_BYTES // group_hbm, 1)
    g_tile = int(min(g_cap, g_target))

    # Output-block second-minor dim must be a multiple of the sublane packing
    # (8 for f32, 16 for bf16, ...) or equal the full array dim.
    sub = 8 * max(1, 4 // max(out_itemsize, 1))

    if g_tile >= n_groups:
        g_tile = n_groups                    # single block == full dim (always legal)
        if n_groups >= 2 * sub:              # v7x megacore: keep >= 2 grid steps
            half = -(-n_groups // 2)
            g_tile = -(-half // sub) * sub
    else:
        g_tile = max((g_tile // sub) * sub, sub)

    num_tiles = -(-n_groups // g_tile)
    vmem_needed = (g_tile * group_vmem
                   + 2 * g_tile * _LANE * max(out_itemsize, 4)
                   + (2 << 20))
    fits = vmem_needed <= int(cap * 0.9)
    vmem_limit = int(min(max(budget, vmem_needed), int(cap * 0.9)))
    return g_tile, num_tiles, vmem_limit, fits


def _norm_rows_kernel(scale, x1_ref, x2_ref, o_ref):
    # x1_ref / x2_ref: (g_tile*128, D) VMEM tiles; o_ref: (g_tile, 128) lane-dense.
    g_tile, lanes = o_ref.shape
    d = x1_ref[...].astype(jnp.float32) - x2_ref[...].astype(jnp.float32)
    d = d.reshape(g_tile, lanes, d.shape[-1])
    # TODO(synk): for narrow D (<~64) this cross-lane sum is XLU-bound; offload the
    # D-reduction to the (idle) MXU via a ones-matrix contraction if this kernel
    # ever becomes hot at large R with a small feature_dim.
    sq = jnp.sum(d * d, axis=-1)                         # (g_tile, 128)
    o_ref[...] = (jnp.sqrt(sq) * scale).astype(o_ref.dtype)


def norm_kernel(x1: jax.Array, x2: jax.Array, *, force_pallas: bool = False) -> jax.Array:
    """Pallas implementation of NormKernel.forward(x1, x2)."""
    assert x1.shape == x2.shape, "x1 and x2 must have the same shape"
    assert x1.ndim >= 1

    scale = 1.0 / math.sqrt(x1.shape[0])                 # len(x1)
    out_dtype = x1.dtype

    if x1.ndim == 1:                                     # degenerate: scalar result
        return _norm_ref_f32(x1, x2, scale, out_dtype)

    *lead, d_dim = x1.shape
    r_rows = math.prod(lead)
    in_itemsize = jnp.dtype(x1.dtype).itemsize
    total_hbm = 2 * r_rows * d_dim * in_itemsize

    # Tiny-input fast path: below ~256 KiB the pallas_call launch and wrapper ops
    # dominate; let XLA fuse the whole expression (covers the module's real shape).
    if r_rows == 0 or d_dim == 0 or (
            not force_pallas and (total_hbm < _FAST_PATH_MAX_BYTES or r_rows < _LANE)):
        return _norm_ref_f32(x1, x2, scale, out_dtype)

    x1f = x1.reshape(r_rows, d_dim)
    x2f = x2.reshape(r_rows, d_dim)
    rows = r_rows
    if rows < _LANE:                                     # only reachable via force_pallas
        pad = _LANE - rows
        x1f = jnp.pad(x1f, ((0, pad), (0, 0)))
        x2f = jnp.pad(x2f, ((0, pad), (0, 0)))
        rows = _LANE

    n_groups = -(-rows // _LANE)                         # output rows of 128 norms each
    out_itemsize = jnp.dtype(out_dtype).itemsize
    g_tile, num_tiles, vmem_limit, fits = _choose_tiling(
        n_groups, d_dim, in_itemsize, out_itemsize)

    if not fits:
        # TODO(synk): add an inner D-reduction grid axis with a VMEM accumulator
        # (pl.when init/finalize) instead of this pure-JAX fallback once feature_dim
        # is too large for a (g_tile*128, D) double-buffered block in VMEM.
        return _norm_ref_f32(x1, x2, scale, out_dtype)

    block_rows = g_tile * _LANE

    out2d = pl.pallas_call(
        functools.partial(_norm_rows_kernel, scale),
        out_shape=jax.ShapeDtypeStruct((n_groups, _LANE), out_dtype),
        grid_spec=pltpu.PrefetchScalarGridSpec(
            num_scalar_prefetch=0,
            grid=(num_tiles,),
            in_specs=[
                pl.BlockSpec((block_rows, d_dim), lambda i: (i, 0)),
                pl.BlockSpec((block_rows, d_dim), lambda i: (i, 0)),
            ],
            out_specs=pl.BlockSpec((g_tile, _LANE), lambda i: (i, 0)),
        ),
        compiler_params=pltpu.CompilerParams(
            dimension_semantics=("parallel",),
            vmem_limit_bytes=vmem_limit,
        ),
    )(x1f, x2f)

    return out2d.reshape(-1)[:r_rows].reshape(tuple(lead))


def norm_kernel_ref(x1, x2):
    """Pure-JAX reference for correctness checking."""
    d = (x1 - x2).astype(jnp.float32)
    return (jnp.linalg.norm(d, axis=-1) / math.sqrt(x1.shape[0])).astype(x1.dtype)


if __name__ == "__main__":
    key = jax.random.PRNGKey(0)
    k1, k2, k3, k4 = jax.random.split(key, 4)

    # Module-consistent small shape: batch=2, points=8, feature_dim=32.
    B, N, D = 2, 8, 32
    x1 = jax.random.normal(k1, (B, N, D), dtype=jnp.float32)
    x2 = jax.random.normal(k2, (B, N, D), dtype=jnp.float32)

    out_fast = norm_kernel(x1, x2)                        # tiny-input fast path
    out_pallas = norm_kernel(x1, x2, force_pallas=True)   # exercise the Pallas kernel
    jax.block_until_ready((out_fast, out_pallas))
    ref = norm_kernel_ref(x1, x2)
    assert out_fast.shape == (B, N), out_fast.shape
    assert out_pallas.shape == (B, N), out_pallas.shape
    assert jnp.allclose(out_fast, ref, atol=1e-5, rtol=1e-5)
    assert jnp.allclose(out_pallas, ref, atol=1e-5, rtol=1e-5)

    # Slightly larger ragged shape: exercises multiple grid tiles + ragged tail
    # (R = 2100 rows -> 17 output groups -> 2 grid steps, no padding copies).
    B2, N2, D2 = 3, 700, 32
    y1 = jax.random.normal(k3, (B2, N2, D2), dtype=jnp.float32)
    y2 = jax.random.normal(k4, (B2, N2, D2), dtype=jnp.float32)
    out2 = norm_kernel(y1, y2)                            # above threshold -> Pallas
    jax.block_until_ready(out2)
    ref2 = norm_kernel_ref(y1, y2)
    assert out2.shape == (B2, N2), out2.shape
    assert jnp.allclose(out2, ref2, atol=1e-4, rtol=1e-4)

    print("KERNEL_OK")
</pallas_src>

<mosaic_0001>
module attributes {stable_mosaic.version = 11 : i64} {
  func.func @_norm_rows_kernel(%arg0: i32, %arg1: memref<128x32xf32, #tpu.memory_space<vmem>>, %arg2: memref<128x32xf32, #tpu.memory_space<vmem>>, %arg3: memref<1x128xf32, #tpu.memory_space<vmem>>) attributes {dimension_semantics = [#tpu.dimension_semantics<parallel>], iteration_bounds = array<i64: 1>, scalar_prefetch = 0 : i64, scratch_operands = 0 : i64, tpu.core_type = #tpu.core_type<tc>, window_params = [{transform_indices = @transform_0, window_bounds = array<i64: 128, 32>}, {transform_indices = @transform_1, window_bounds = array<i64: 128, 32>}, {transform_indices = @transform_2, window_bounds = array<i64: 1, 128>}]} {
    %c0 = arith.constant 0 : index
    %c0_0 = arith.constant 0 : index
    %0 = vector.load %arg1[%c0, %c0_0] : memref<128x32xf32, #tpu.memory_space<vmem>>, vector<128x32xf32>
    %c0_1 = arith.constant 0 : index
    %c0_2 = arith.constant 0 : index
    %1 = vector.load %arg2[%c0_1, %c0_2] : memref<128x32xf32, #tpu.memory_space<vmem>>, vector<128x32xf32>
    %2 = arith.subf %0, %1 : vector<128x32xf32>
    %3 = vector.shape_cast %2 : vector<128x32xf32> to vector<1x128x32xf32>
    %4 = arith.mulf %3, %3 : vector<1x128x32xf32>
    %cst = arith.constant dense<0.000000e+00> : vector<1x128xf32>
    %5 = vector.multi_reduction <add>, %4, %cst [2] : vector<1x128x32xf32> to vector<1x128xf32>
    %6 = math.sqrt %5 : vector<1x128xf32>
    %cst_3 = arith.constant 0.707106769 : f32
    %7 = vector.broadcast %cst_3 : f32 to vector<1x128xf32>
    %8 = arith.mulf %6, %7 : vector<1x128xf32>
    %c0_4 = arith.constant 0 : index
    %c0_5 = arith.constant 0 : index
    %9 = vector.load %arg3[%c0_4, %c0_5] : memref<1x128xf32, #tpu.memory_space<vmem>>, vector<1x128xf32>
    tpu.vector_store %arg3[%c0_4, %c0_5], %8 {strides = array<i32>} : memref<1x128xf32, #tpu.memory_space<vmem>>, vector<1x128xf32>,
    return
  }
  func.func @transform_0(%arg0: i32) -> (i32, i32) {
    %c0_i32 = arith.constant 0 : i32
    %c0_i32_0 = arith.constant 0 : i32
    return %arg0, %c0_i32 : i32, i32
  }
  func.func @transform_1(%arg0: i32) -> (i32, i32) {
    %c0_i32 = arith.constant 0 : i32
    %c0_i32_0 = arith.constant 0 : i32
    return %arg0, %c0_i32 : i32, i32
  }
  func.func @transform_2(%arg0: i32) -> (i32, i32) {
    %c0_i32 = arith.constant 0 : i32
    %c0_i32_0 = arith.constant 0 : i32
    return %arg0, %c0_i32 : i32, i32
  }
}

</mosaic_0001>

<llo_original>
// kernel: tpu_custom_call.1
$region0: #{tpu_custom_call.1}
  #allocation0 [shape = 'u32[]', space=smem, size = 0x4, offset = 0x4, fixed_abs, tag = 'smem constant byte address 0x4 - core index']
  #allocation1 [shape = 'u32[144,128]{1,0:T(1,128)}', space=vmem, size = 0x12000, scoped, tag = 'internal scratch']
  %s0 = inlined_call_operand.vmem [shape: f32[128,32], index: 0, kind: input, shape index: {}]
  %s1 = inlined_call_operand.vmem [shape: f32[128,32], index: 1, kind: input, shape index: {}]
  %s2 = inlined_call_operand.hbm [shape: f32[1,128], index: 2, kind: output, shape index: {}]
  %s3 = sld [smem:[#allocation0]]
  $region18: #{tpu_custom_call.1} parent=0
    _
  %s5 = ssub.s32 1, %s3
  %s6 = scalar_select 0, %s5, %s3
  $region1: #{tpu_custom_call.1} parent=0
    #allocation2 [shape = 'u8[512]{0}', space=vmem, size = 0x400, scoped, tag = 'output window, operand 0, single buffered']
    #allocation3 [shape = 's32[1]{0}', space=sflag, size = 0x4, scoped, tag = 'scoped memory for tpu_custom_call.1']
    %7 = vsyncpa [#allocation3], 0
    // Predicated region
    $region2: #{tpu_custom_call.1} parent=1 // pred_check
      _
    $region3: #{tpu_custom_call.1} parent=1 // pred_check_branch
      %9 = sbr.rel (0) target = $region5
    $region4: #{tpu_custom_call.1} parent=1 // pred_region
      _
    $region5: #{tpu_custom_call.1} parent=1 // pred_fallthru
      _
    // Predicated region
    $region6: #{tpu_custom_call.1} parent=1 // pred_check
      _
    $region7: #{tpu_custom_call.1} parent=1 // pred_check_branch
      %11 = sbr.rel (0) target = $region9
    $region8: #{tpu_custom_call.1} parent=1 // pred_region
      _
    $region9: #{tpu_custom_call.1} parent=1 // pred_fallthru
      _
    %v12 = vld [vmem:[%s0] sm:$0xff]
    %v13 = vld [vmem:[%s0 + $0x8] sm:$0xff]
    %v14 = vld [vmem:[%s0 + $0x10] sm:$0xff]
    %v15 = vld [vmem:[%s0 + $0x18] sm:$0xff]
    %v16 = vld [vmem:[%s0 + $0x20] sm:$0xff]
    %v17 = vld [vmem:[%s0 + $0x28] sm:$0xff]
    %v18 = vld [vmem:[%s0 + $0x30] sm:$0xff]
    %v19 = vld [vmem:[%s0 + $0x38] sm:$0xff]
    %v20 = vld [vmem:[%s0 + $0x40] sm:$0xff]
    %v21 = vld [vmem:[%s0 + $0x48] sm:$0xff]
    %v22 = vld [vmem:[%s0 + $0x50] sm:$0xff]
    %v23 = vld [vmem:[%s0 + $0x58] sm:$0xff]
    %v24 = vld [vmem:[%s0 + $0x60] sm:$0xff]
    %v25 = vld [vmem:[%s0 + $0x68] sm:$0xff]
    %v26 = vld [vmem:[%s0 + $0x70] sm:$0xff]
    %v27 = vld [vmem:[%s0 + $0x78] sm:$0xff]
    %v28 = vld [vmem:[%s1] sm:$0xff]
    %v29 = vld [vmem:[%s1 + $0x8] sm:$0xff]
    %v30 = vld [vmem:[%s1 + $0x10] sm:$0xff]
    %v31 = vld [vmem:[%s1 + $0x18] sm:$0xff]
    %v32 = vld [vmem:[%s1 + $0x20] sm:$0xff]
    %v33 = vld [vmem:[%s1 + $0x28] sm:$0xff]
    %v34 = vld [vmem:[%s1 + $0x30] sm:$0xff]
    %v35 = vld [vmem:[%s1 + $0x38] sm:$0xff]
    %v36 = vld [vmem:[%s1 + $0x40] sm:$0xff]
    %v37 = vld [vmem:[%s1 + $0x48] sm:$0xff]
    %v38 = vld [vmem:[%s1 + $0x50] sm:$0xff]
    %v39 = vld [vmem:[%s1 + $0x58] sm:$0xff]
    %v40 = vld [vmem:[%s1 + $0x60] sm:$0xff]
    %v41 = vld [vmem:[%s1 + $0x68] sm:$0xff]
    %v42 = vld [vmem:[%s1 + $0x70] sm:$0xff]
    %v43 = vld [vmem:[%s1 + $0x78] sm:$0xff]
    %v44 = vsub.f32 %v12, %v28
    %v45 = vsub.f32 %v13, %v29
    %v46 = vsub.f32 %v14, %v30
    %v47 = vsub.f32 %v15, %v31
    %v48 = vsub.f32 %v16, %v32
    %v49 = vsub.f32 %v17, %v33
    %v50 = vsub.f32 %v18, %v34
    %v51 = vsub.f32 %v19, %v35
    %v52 = vsub.f32 %v20, %v36
    %v53 = vsub.f32 %v21, %v37
    %v54 = vsub.f32 %v22, %v38
    %v55 = vsub.f32 %v23, %v39
    %v56 = vsub.f32 %v24, %v40
    %v57 = vsub.f32 %v25, %v41
    %v58 = vsub.f32 %v26, %v42
    %v59 = vsub.f32 %v27, %v43
    %v60 = vmul.f32 %v44, %v44
    %v61 = vmul.f32 %v45, %v45
    %v62 = vmul.f32 %v46, %v46
    %v63 = vmul.f32 %v47, %v47
    %v64 = vmul.f32 %v48, %v48
    %v65 = vmul.f32 %v49, %v49
    %v66 = vmul.f32 %v50, %v50
    %v67 = vmul.f32 %v51, %v51
    %v68 = vmul.f32 %v52, %v52
    %v69 = vmul.f32 %v53, %v53
    %v70 = vmul.f32 %v54, %v54
    %v71 = vmul.f32 %v55, %v55
    %v72 = vmul.f32 %v56, %v56
    %v73 = vmul.f32 %v57, %v57
    %v74 = vmul.f32 %v58, %v58
    %v75 = vmul.f32 %v59, %v59
    %vm76 = vcmask 261120
    %v77 = vsel %vm76, %v60, 0.0
    %78 = vadd.xlane.f32.xlu0 %v77
    %v79 = vpop.xlane.xlu0 %78
    %v80 = vsel %vm76, %v61, 0.0
    %81 = vadd.xlane.f32.xlu0 %v80
    %v82 = vpop.xlane.xlu0 %81
    %v83 = vsel %vm76, %v62, 0.0
    %84 = vadd.xlane.f32.xlu0 %v83
    %v85 = vpop.xlane.xlu0 %84
    %v86 = vsel %vm76, %v63, 0.0
    %87 = vadd.xlane.f32.xlu0 %v86
    %v88 = vpop.xlane.xlu0 %87
    %v89 = vsel %vm76, %v64, 0.0
    %90 = vadd.xlane.f32.xlu0 %v89
    %v91 = vpop.xlane.xlu0 %90
    %v92 = vsel %vm76, %v65, 0.0
    %93 = vadd.xlane.f32.xlu0 %v92
    %v94 = vpop.xlane.xlu0 %93
    %v95 = vsel %vm76, %v66, 0.0
    %96 = vadd.xlane.f32.xlu0 %v95
    %v97 = vpop.xlane.xlu0 %96
    %v98 = vsel %vm76, %v67, 0.0
    %99 = vadd.xlane.f32.xlu0 %v98
    %v100 = vpop.xlane.xlu0 %99
    %v101 = vsel %vm76, %v68, 0.0
    %102 = vadd.xlane.f32.xlu0 %v101
    %v103 = vpop.xlane.xlu0 %102
    %v104 = vsel %vm76, %v69, 0.0
    %105 = vadd.xlane.f32.xlu0 %v104
    %v106 = vpop.xlane.xlu0 %105
    %v107 = vsel %vm76, %v70, 0.0
    %108 = vadd.xlane.f32.xlu0 %v107
    %v109 = vpop.xlane.xlu0 %108
    %v110 = vsel %vm76, %v71, 0.0
    %111 = vadd.xlane.f32.xlu0 %v110
    %v112 = vpop.xlane.xlu0 %111
    %v113 = vsel %vm76, %v72, 0.0
    %114 = vadd.xlane.f32.xlu0 %v113
    %v115 = vpop.xlane.xlu0 %114
    %v116 = vsel %vm76, %v73, 0.0
    %117 = vadd.xlane.f32.xlu0 %v116
    %v118 = vpop.xlane.xlu0 %117
    %v119 = vsel %vm76, %v74, 0.0
    %120 = vadd.xlane.f32.xlu0 %v119
    %v121 = vpop.xlane.xlu0 %120
    %v122 = vsel %vm76, %v75, 0.0
    %123 = vadd.xlane.f32.xlu0 %v122
    %v124 = vpop.xlane.xlu0 %123
    %v125 = vrsqrt.pop %v79
    %v126 = vmul.f32 %v79, %v125
    %vm127 = vcmp.eq.f32.partialorder %v79, inf
    %v128 = vsel %vm127, %v79, %v126
    %vm129 = vcmp.eq.f32.partialorder %v79, 0.0
    %v130 = vand.u32 %v79, 2147483648
    %v131 = vsel %vm129, %v130, %v128
    %v132 = vrsqrt.pop %v82
    %v133 = vmul.f32 %v82, %v132
    %vm134 = vcmp.eq.f32.partialorder %v82, inf
    %v135 = vsel %vm134, %v82, %v133
    %vm136 = vcmp.eq.f32.partialorder %v82, 0.0
    %v137 = vand.u32 %v82, 2147483648
    %v138 = vsel %vm136, %v137, %v135
    %v139 = vrsqrt.pop %v85
    %v140 = vmul.f32 %v85, %v139
    %vm141 = vcmp.eq.f32.partialorder %v85, inf
    %v142 = vsel %vm141, %v85, %v140
    %vm143 = vcmp.eq.f32.partialorder %v85, 0.0
    %v144 = vand.u32 %v85, 2147483648
    %v145 = vsel %vm143, %v144, %v142
    %v146 = vrsqrt.pop %v88
    %v147 = vmul.f32 %v88, %v146
    %vm148 = vcmp.eq.f32.partialorder %v88, inf
    %v149 = vsel %vm148, %v88, %v147
    %vm150 = vcmp.eq.f32.partialorder %v88, 0.0
    %v151 = vand.u32 %v88, 2147483648
    %v152 = vsel %vm150, %v151, %v149
    %v153 = vrsqrt.pop %v91
    %v154 = vmul.f32 %v91, %v153
    %vm155 = vcmp.eq.f32.partialorder %v91, inf
    %v156 = vsel %vm155, %v91, %v154
    %vm157 = vcmp.eq.f32.partialorder %v91, 0.0
    %v158 = vand.u32 %v91, 2147483648
    %v159 = vsel %vm157, %v158, %v156
    %v160 = vrsqrt.pop %v94
    %v161 = vmul.f32 %v94, %v160
    %vm162 = vcmp.eq.f32.partialorder %v94, inf
    %v163 = vsel %vm162, %v94, %v161
    %vm164 = vcmp.eq.f32.partialorder %v94, 0.0
    %v165 = vand.u32 %v94, 2147483648
    %v166 = vsel %vm164, %v165, %v163
    %v167 = vrsqrt.pop %v97
    %v168 = vmul.f32 %v97, %v167
    %vm169 = vcmp.eq.f32.partialorder %v97, inf
    %v170 = vsel %vm169, %v97, %v168
    %vm171 = vcmp.eq.f32.partialorder %v97, 0.0
    %v172 = vand.u32 %v97, 2147483648
    %v173 = vsel %vm171, %v172, %v170
    %v174 = vrsqrt.pop %v100
    %v175 = vmul.f32 %v100, %v174
    %vm176 = vcmp.eq.f32.partialorder %v100, inf
    %v177 = vsel %vm176, %v100, %v175
    %vm178 = vcmp.eq.f32.partialorder %v100, 0.0
    %v179 = vand.u32 %v100, 2147483648
    %v180 = vsel %vm178, %v179, %v177
    %v181 = vrsqrt.pop %v103
    %v182 = vmul.f32 %v103, %v181
    %vm183 = vcmp.eq.f32.partialorder %v103, inf
    %v184 = vsel %vm183, %v103, %v182
    %vm185 = vcmp.eq.f32.partialorder %v103, 0.0
    %v186 = vand.u32 %v103, 2147483648
    %v187 = vsel %vm185, %v186, %v184
    %v188 = vrsqrt.pop %v106
    %v189 = vmul.f32 %v106, %v188
    %vm190 = vcmp.eq.f32.partialorder %v106, inf
    %v191 = vsel %vm190, %v106, %v189
    %vm192 = vcmp.eq.f32.partialorder %v106, 0.0
    %v193 = vand.u32 %v106, 2147483648
    %v194 = vsel %vm192, %v193, %v191
    %v195 = vrsqrt.pop %v109
    %v196 = vmul.f32 %v109, %v195
    %vm197 = vcmp.eq.f32.partialorder %v109, inf
    %v198 = vsel %vm197, %v109, %v196
    %vm199 = vcmp.eq.f32.partialorder %v109, 0.0
    %v200 = vand.u32 %v109, 2147483648
    %v201 = vsel %vm199, %v200, %v198
    %v202 = vrsqrt.pop %v112
    %v203 = vmul.f32 %v112, %v202
    %vm204 = vcmp.eq.f32.partialorder %v112, inf
    %v205 = vsel %vm204, %v112, %v203
    %vm206 = vcmp.eq.f32.partialorder %v112, 0.0
    %v207 = vand.u32 %v112, 2147483648
    %v208 = vsel %vm206, %v207, %v205
    %v209 = vrsqrt.pop %v115
    %v210 = vmul.f32 %v115, %v209
    %vm211 = vcmp.eq.f32.partialorder %v115, inf
    %v212 = vsel %vm211, %v115, %v210
    %vm213 = vcmp.eq.f32.partialorder %v115, 0.0
    %v214 = vand.u32 %v115, 2147483648
    %v215 = vsel %vm213, %v214, %v212
    %v216 = vrsqrt.pop %v118
    %v217 = vmul.f32 %v118, %v216
    %vm218 = vcmp.eq.f32.partialorder %v118, inf
    %v219 = vsel %vm218, %v118, %v217
    %vm220 = vcmp.eq.f32.partialorder %v118, 0.0
    %v221 = vand.u32 %v118, 2147483648
    %v222 = vsel %vm220, %v221, %v219
    %v223 = vrsqrt.pop %v121
    %v224 = vmul.f32 %v121, %v223
    %vm225 = vcmp.eq.f32.partialorder %v121, inf
    %v226 = vsel %vm225, %v121, %v224
    %vm227 = vcmp.eq.f32.partialorder %v121, 0.0
    %v228 = vand.u32 %v121, 2147483648
    %v229 = vsel %vm227, %v228, %v226
    %v230 = vrsqrt.pop %v124
    %v231 = vmul.f32 %v124, %v230
    %vm232 = vcmp.eq.f32.partialorder %v124, inf
    %v233 = vsel %vm232, %v124, %v231
    %vm234 = vcmp.eq.f32.partialorder %v124, 0.0
    %v235 = vand.u32 %v124, 2147483648
    %v236 = vsel %vm234, %v235, %v233
    %v237 = vmul.f32 %v131, 0.70710677
    %v238 = vmul.f32 %v138, 0.70710677
    %v239 = vmul.f32 %v145, 0.70710677
    %v240 = vmul.f32 %v152, 0.70710677
    %v241 = vmul.f32 %v159, 0.70710677
    %v242 = vmul.f32 %v166, 0.70710677
    %v243 = vmul.f32 %v173, 0.70710677
    %v244 = vmul.f32 %v180, 0.70710677
    %v245 = vmul.f32 %v187, 0.70710677
    %v246 = vmul.f32 %v194, 0.70710677
    %v247 = vmul.f32 %v201, 0.70710677
    %v248 = vmul.f32 %v208, 0.70710677
    %v249 = vmul.f32 %v215, 0.70710677
    %v250 = vmul.f32 %v222, 0.70710677
    %v251 = vmul.f32 %v229, 0.70710677
    %v252 = vmul.f32 %v236, 0.70710677
    %v269 = vlaneseq
    %v270 = vand.u32 %v269, 127
    %v271 = vlaneseq
    %v272 = vshrl.u32 %v271, 7
    %v273 = vsub.s32 %v270, %v272
    %v274 = vrot.slane %v237, %v273
    %v275 = vadd.s32 %v270, 4294967288
    %v276 = vlaneseq
    %v277 = vshrl.u32 %v276, 7
    %v278 = vsub.s32 %v275, %v277
    %v279 = vrot.slane %v238, %v278
    %vm280 = vcmask 130112
    %v281 = vsel %vm280, %v279, %v274
    %v282 = vadd.s32 %v270, 4294967280
    %v283 = vlaneseq
    %v284 = vshrl.u32 %v283, 7
    %v285 = vsub.s32 %v282, %v284
    %v286 = vrot.slane %v239, %v285
    %vm287 = vcmask 195712
    %v288 = vsel %vm287, %v286, %v281
    %v289 = vadd.s32 %v270, 4294967272
    %v290 = vlaneseq
    %v291 = vshrl.u32 %v290, 7
    %v292 = vsub.s32 %v289, %v291
    %v293 = vrot.slane %v240, %v292
    %vm294 = vcmask 261312
    %v295 = vsel %vm294, %v293, %v288
    %v296 = vadd.s32 %v270, 4294967264
    %v297 = vlaneseq
    %v298 = vshrl.u32 %v297, 7
    %v299 = vsub.s32 %v296, %v298
    %v300 = vrot.slane %v241, %v299
    %vm301 = vcmask 326912
    %v302 = vsel %vm301, %v300, %v295
    %v303 = vadd.s32 %v270, 4294967256
    %v304 = vlaneseq
    %v305 = vshrl.u32 %v304, 7
    %v306 = vsub.s32 %v303, %v305
    %v307 = vrot.slane %v242, %v306
    %vm308 = vcmask 392512
    %v309 = vsel %vm308, %v307, %v302
    %v310 = vadd.s32 %v270, 4294967248
    %v311 = vlaneseq
    %v312 = vshrl.u32 %v311, 7
    %v313 = vsub.s32 %v310, %v312
    %v314 = vrot.slane %v243, %v313
    %vm315 = vcmask 458112
    %v316 = vsel %vm315, %v314, %v309
    %v317 = vadd.s32 %v270, 4294967240
    %v318 = vlaneseq
    %v319 = vshrl.u32 %v318, 7
    %v320 = vsub.s32 %v317, %v319
    %v321 = vrot.slane %v244, %v320
    %vm322 = vcmask 523712
    %v323 = vsel %vm322, %v321, %v316
    %v324 = vadd.s32 %v270, 4294967232
    %v325 = vlaneseq
    %v326 = vshrl.u32 %v325, 7
    %v327 = vsub.s32 %v324, %v326
    %v328 = vrot.slane %v245, %v327
    %vm329 = vcmask 589312
    %v330 = vsel %vm329, %v328, %v323
    %v331 = vadd.s32 %v270, 4294967224
    %v332 = vlaneseq
    %v333 = vshrl.u32 %v332, 7
    %v334 = vsub.s32 %v331, %v333
    %v335 = vrot.slane %v246, %v334
    %vm336 = vcmask 654912
    %v337 = vsel %vm336, %v335, %v330
    %v338 = vadd.s32 %v270, 4294967216
    %v339 = vlaneseq
    %v340 = vshrl.u32 %v339, 7
    %v341 = vsub.s32 %v338, %v340
    %v342 = vrot.slane %v247, %v341
    %vm343 = vcmask 720512
    %v344 = vsel %vm343, %v342, %v337
    %v345 = vadd.s32 %v270, 4294967208
    %v346 = vlaneseq
    %v347 = vshrl.u32 %v346, 7
    %v348 = vsub.s32 %v345, %v347
    %v349 = vrot.slane %v248, %v348
    %vm350 = vcmask 786112
    %v351 = vsel %vm350, %v349, %v344
    %v352 = vadd.s32 %v270, 4294967200
    %v353 = vlaneseq
    %v354 = vshrl.u32 %v353, 7
    %v355 = vsub.s32 %v352, %v354
    %v356 = vrot.slane %v249, %v355
    %vm357 = vcmask 851712
    %v358 = vsel %vm357, %v356, %v351
    %v359 = vadd.s32 %v270, 4294967192
    %v360 = vlaneseq
    %v361 = vshrl.u32 %v360, 7
    %v362 = vsub.s32 %v359, %v361
    %v363 = vrot.slane %v250, %v362
    %vm364 = vcmask 917312
    %v365 = vsel %vm364, %v363, %v358
    %v366 = vadd.s32 %v270, 4294967184
    %v367 = vlaneseq
    %v368 = vshrl.u32 %v367, 7
    %v369 = vsub.s32 %v366, %v368
    %v370 = vrot.slane %v251, %v369
    %vm371 = vcmask 982912
    %v372 = vsel %vm371, %v370, %v365
    %v373 = vadd.s32 %v270, 4294967176
    %v374 = vlaneseq
    %v375 = vshrl.u32 %v374, 7
    %v376 = vsub.s32 %v373, %v375
    %v377 = vrot.slane %v252, %v376
    %vm378 = vcmask 1048512
    %v379 = vsel %vm378, %v377, %v372
    %381 = vst [vmem:[#allocation2] sm:$0x1] %v379
    // Predicated region
    $region10: #{tpu_custom_call.1} parent=1 // pred_check
      _
    $region11: #{tpu_custom_call.1} parent=1 // pred_check_branch
      %383 = sbr.rel (0) target = $region13
    $region12: #{tpu_custom_call.1} parent=1 // pred_region
      %s385 = ssub.s32 16, 16
      %386 = vsyncadd [#allocation3], %s385
      %s388 = sshll.u32 [#allocation2], 4
      %s389 = int_to_ptr.vmem [resolvable:$true] %s388
      %391 = dma.vmem_to_hbm [thread:$0]  %s389, 16, %s2, [#allocation3]
    $region13: #{tpu_custom_call.1} parent=1 // pred_fallthru
      _
    // Predicated region
    $region14: #{tpu_custom_call.1} parent=1 // pred_check
      _
    $region15: #{tpu_custom_call.1} parent=1 // pred_check_branch
      %393 = sbr.rel (0) target = $region17
    $region16: #{tpu_custom_call.1} parent=1 // pred_region
      %394 = dma.done [#allocation3], 16
    $region17: #{tpu_custom_call.1} parent=1 // pred_fallthru
      _
    %395 = vsyncpa [#allocation3], 1

</llo_original>
